<compile_context>
chip_gen: v6e
topology: v6e:2x2x1
jax: 0.10.0
libtpu: 0.0.40
codegen_flags: <defaults>
</compile_context>

<pallas_src>
import jax
import jax.numpy as jnp
from jax.experimental import pallas as pl
from jax.experimental.pallas import tpu as pltpu


def _vq_kernel(za_ref, ea_ref, zq_ref, idx_ref, sse_ref):
    za = za_ref[...].astype(jnp.float32)     # (d+1, tm): rows 0..d-1 = z^T, row d = 1
    ea = ea_ref[...].astype(jnp.float32)     # (k, d+1):  cols 0..d-1 = -2*e, col d = ||e||^2
    d = za.shape[0] - 1
    k = ea.shape[0]

    # Squared distance up to the argmin-invariant ||z||^2 term, straight off
    # the MXU:  dist_t[k, m] = ||e_k||^2 - 2 <e_k, z_m>.   (k, tm) lane-dense.
    dist_t = jax.lax.dot_general(
        ea, za,
        dimension_numbers=(((1,), (0,)), ((), ())),
        preferred_element_type=jnp.float32,
    )

    # First-occurrence argmin over the codebook (sublane) axis via
    # min-reductions; the result lands directly as a lane-dense (1, tm) row.
    code_iota = jax.lax.broadcasted_iota(
        jnp.int32, dist_t.shape, 0).astype(jnp.float32)            # (k, tm)
    d_min = jnp.min(dist_t, axis=0, keepdims=True)                 # (1, tm)
    idx_f = jnp.min(
        jnp.where(dist_t == d_min, code_iota, float(k)),
        axis=0, keepdims=True)                                     # (1, tm)
    idx_ref[...] = idx_f.astype(jnp.int32)

    # Gather the selected code vectors with a one-hot MXU matmul (fine for
    # small k; for production-sized codebooks prefer an in-VMEM row gather).
    # e is recovered exactly from e_aug (multiply by -0.5, a power of two).
    one_hot_t = (code_iota == idx_f).astype(jnp.float32)           # (k, tm)
    e = ea[:, :d] * jnp.float32(-0.5)                              # (k, d)
    zq_t = jax.lax.dot_general(
        e, one_hot_t,
        dimension_numbers=(((0,), (0,)), ((), ())),
        preferred_element_type=jnp.float32,
    )                                                              # (d, tm)
    zq_ref[...] = zq_t.astype(zq_ref.dtype)

    # Per-row squared error as a lane-dense (1, tm) row; the wrapper sums the
    # rows and applies the (1 + beta) / (M * d) scale.
    diff = za[:d, :] - zq_t
    sse_ref[...] = jnp.sum(diff * diff, axis=0, keepdims=True)


def _pick_tile(m, requested):
    """Largest lane tile <= requested that is a multiple of 128, divides m,
    and (when possible) yields >= 2 grid steps for v7x megacore sharding."""
    tm = min(requested, m)
    tm = max(128, (tm // 128) * 128)
    while m % tm:
        tm -= 128
    if m // tm < 2:
        half = m // 2
        if half >= 128 and half % 128 == 0:
            tm = half
    return tm


def vector_quantization(z_nchw, embs, beta, *, tm=1024):
    """Forward pass of VectorQuantization.  Returns (z_q_nchw, min_idxs, loss)."""
    n, c, h, w = z_nchw.shape
    k, d = embs.shape
    assert c == d, "channel dim must equal embedding dim d"
    m = n * h * w
    # TODO(synk): general shapes need padding/masking; demo shapes divide evenly.
    assert m % 128 == 0, "flattened N*H*W must be a multiple of 128"

    # Channels-leading flat view (d, M): a cheap leading-axis permute, not a
    # full NHWC relayout.  Row ordering of M is (n, h, w), matching the
    # PyTorch permute(0,2,3,1).view(-1, d) flattening.
    z_t = jnp.transpose(z_nchw, (1, 0, 2, 3)).reshape(d, m).astype(jnp.float32)
    # Ones row so e_aug @ z_aug = ||e||^2 - 2 e.z comes straight off the MXU.
    z_aug = jnp.concatenate([z_t, jnp.ones((1, m), jnp.float32)], axis=0)   # (d+1, M)

    e32 = embs.astype(jnp.float32)
    e_sq = jnp.sum(e32 * e32, axis=1, keepdims=True)                        # (k, 1)
    e_aug = jnp.concatenate([-2.0 * e32, e_sq], axis=1)                     # (k, d+1)

    tm = _pick_tile(m, tm)
    num_tiles = m // tm

    cost = pl.CostEstimate(
        flops=2 * k * (2 * d + 1) * m,            # distance + one-hot gather matmuls
        transcendentals=0,
        bytes_accessed=4 * ((d + 1) * m + k * (d + 1) + d * m + 2 * m),
    )

    zq_t, idx_row, sse_row = pl.pallas_call(
        _vq_kernel,
        out_shape=(
            jax.ShapeDtypeStruct((d, m), jnp.float32),    # z_q^T, lane-dense
            jax.ShapeDtypeStruct((1, m), jnp.int32),      # indices, lane-dense row
            jax.ShapeDtypeStruct((1, m), jnp.float32),    # per-row SSE partials
        ),
        grid_spec=pltpu.PrefetchScalarGridSpec(
            num_scalar_prefetch=0,
            grid=(num_tiles,),
            in_specs=[
                pl.BlockSpec((d + 1, tm), lambda i: (0, i)),
                # Constant codebook block.  NOTE(perf): for production-sized
                # codebooks add pipeline_mode=pl.Buffered(1) plus an explicit
                # vmem_limit_bytes (and tile the codebook axis) so it is not
                # double-buffered against v7x's 64 MiB VMEM / v5e's 16 MiB
                # scoped default.
                pl.BlockSpec((k, d + 1), lambda i: (0, 0)),
            ],
            out_specs=[
                pl.BlockSpec((d, tm), lambda i: (0, i)),
                pl.BlockSpec((1, tm), lambda i: (0, i)),
                pl.BlockSpec((1, tm), lambda i: (0, i)),
            ],
        ),
        compiler_params=pltpu.CompilerParams(
            # No cross-iteration state -> fully parallel grid axis; with
            # num_tiles >= 2 this shards across v7x's two TensorCores.
            dimension_semantics=("parallel",),
        ),
        cost_estimate=cost,
    )(z_aug, e_aug)

    # vq_loss + beta * commit_loss; both equal mean((z - z_q)^2) in the
    # forward pass, so scale the summed squared error by (1+beta)/(M*d).
    loss = jnp.sum(sse_row) * ((1.0 + float(beta)) / float(m * d))

    # straight-through:  z + (z_q - z).detach() == z_q in the forward pass.
    # (d, M) -> (d, n, h, w) -> NCHW is again a cheap leading-axis permute.
    z_q_nchw = jnp.transpose(zq_t.reshape(d, n, h, w), (1, 0, 2, 3))
    min_idxs = idx_row.reshape(-1)
    return z_q_nchw, min_idxs, loss


def _reference(z_nchw, embs, beta):
    """Pure-JAX reference matching the PyTorch module."""
    n, c, h, w = z_nchw.shape
    z = jnp.transpose(z_nchw, (0, 2, 3, 1))
    z_flat = z.reshape(-1, c)
    dist = jnp.sum((z_flat[:, None, :] - embs[None, :, :]) ** 2, axis=-1)
    idx = jnp.argmin(dist, axis=1)
    z_q = embs[idx].reshape(z.shape)
    vq_loss = jnp.mean((z - z_q) ** 2)
    commit_loss = jnp.mean((z_q - z) ** 2)
    loss = vq_loss + beta * commit_loss
    z_q = jnp.transpose(z_q, (0, 3, 1, 2))
    return z_q, idx, loss


if __name__ == "__main__":
    # Module hyper-parameters (args.k, args.d, args.beta)
    K, D, BETA = 32, 4, 0.25
    N, H, W = 2, 16, 16  # input x: [2, 4, 16, 16] in NCHW

    key = jax.random.PRNGKey(0)
    kx, ke = jax.random.split(key)
    x = jax.random.normal(kx, (N, D, H, W), dtype=jnp.float32)
    # nn.Embedding(k, d).weight.data.uniform_(-1/k, 1/k)
    embs = jax.random.uniform(ke, (K, D), dtype=jnp.float32,
                              minval=-1.0 / K, maxval=1.0 / K)

    z_q, min_idxs, loss = vector_quantization(x, embs, BETA)
    jax.block_until_ready((z_q, min_idxs, loss))

    # sanity check against a pure-JAX reference
    # (near-ties in argmin can in principle differ since the kernel drops the
    #  ||z||^2 term; with continuous random data this does not occur)
    zq_ref, idx_ref, loss_ref = _reference(x, embs, BETA)
    assert z_q.shape == (N, D, H, W) and min_idxs.shape == (N * H * W,)
    assert jnp.allclose(z_q, zq_ref, atol=1e-5)
    assert jnp.array_equal(min_idxs, idx_ref)
    assert jnp.allclose(loss, loss_ref, atol=1e-5)

    print("KERNEL_OK")
</pallas_src>

<mosaic_0001>
module attributes {stable_mosaic.version = 11 : i64} {
  func.func @_vq_kernel(%arg0: i32, %arg1: memref<5x256xf32, #tpu.memory_space<vmem>>, %arg2: memref<32x5xf32, #tpu.memory_space<vmem>>, %arg3: memref<4x256xf32, #tpu.memory_space<vmem>>, %arg4: memref<1x256xi32, #tpu.memory_space<vmem>>, %arg5: memref<1x256xf32, #tpu.memory_space<vmem>>) attributes {dimension_semantics = [#tpu.dimension_semantics<parallel>], iteration_bounds = array<i64: 2>, scalar_prefetch = 0 : i64, scratch_operands = 0 : i64, tpu.core_type = #tpu.core_type<tc>, window_params = [{transform_indices = @transform_0, window_bounds = array<i64: 5, 256>}, {pipeline_mode = #tpu.pipeline_mode<synchronous>, transform_indices = @transform_1, window_bounds = array<i64: 32, 5>}, {transform_indices = @transform_2, window_bounds = array<i64: 4, 256>}, {transform_indices = @transform_3, window_bounds = array<i64: 1, 256>}, {transform_indices = @transform_4, window_bounds = array<i64: 1, 256>}]} {
    %c0 = arith.constant 0 : index
    %c0_0 = arith.constant 0 : index
    %0 = vector.load %arg1[%c0, %c0_0] : memref<5x256xf32, #tpu.memory_space<vmem>>, vector<5x256xf32>
    %c0_1 = arith.constant 0 : index
    %c0_2 = arith.constant 0 : index
    %1 = vector.load %arg2[%c0_1, %c0_2] : memref<32x5xf32, #tpu.memory_space<vmem>>, vector<32x5xf32>
    %cst = arith.constant dense<0.000000e+00> : vector<32x256xf32>
    %2 = tpu.matmul %1, %0, %cst {dimension_numbers = #tpu.dot_dimension_numbers<[1], [0], [0], [1], [0, 0, 1, 1], [], []>} : vector<32x5xf32>, vector<5x256xf32>, vector<32x256xf32> -> vector<32x256xf32>
    %3 = tpu.iota {dimensions = array<i32: 0>} : vector<32x256xi32>
    %4 = arith.sitofp %3 : vector<32x256xi32> to vector<32x256xf32>
    %cst_3 = arith.constant dense<0x7F800000> : vector<256xf32>
    %5 = vector.multi_reduction <minimumf>, %2, %cst_3 [0] : vector<32x256xf32> to vector<256xf32>
    %6 = vector.shape_cast %5 : vector<256xf32> to vector<1x256xf32>
    %7 = vector.broadcast %6 : vector<1x256xf32> to vector<32x256xf32>
    %8 = arith.cmpf oeq, %2, %7 : vector<32x256xf32>
    %cst_4 = arith.constant 3.200000e+01 : f32
    %9 = vector.broadcast %cst_4 : f32 to vector<32x256xf32>
    %10 = arith.select %8, %4, %9 : vector<32x256xi1>, vector<32x256xf32>
    %cst_5 = arith.constant dense<0x7F800000> : vector<256xf32>
    %11 = vector.multi_reduction <minimumf>, %10, %cst_5 [0] : vector<32x256xf32> to vector<256xf32>
    %12 = vector.shape_cast %11 : vector<256xf32> to vector<1x256xf32>
    %13 = arith.fptosi %12 : vector<1x256xf32> to vector<1x256xi32>
    %c0_6 = arith.constant 0 : index
    %c0_7 = arith.constant 0 : index
    %14 = vector.load %arg4[%c0_6, %c0_7] : memref<1x256xi32, #tpu.memory_space<vmem>>, vector<1x256xi32>
    tpu.vector_store %arg4[%c0_6, %c0_7], %13 {strides = array<i32>} : memref<1x256xi32, #tpu.memory_space<vmem>>, vector<1x256xi32>,
    %15 = vector.broadcast %12 : vector<1x256xf32> to vector<32x256xf32>
    %16 = arith.cmpf oeq, %4, %15 : vector<32x256xf32>
    %17 = arith.extui %16 : vector<32x256xi1> to vector<32x256xi32>
    %18 = arith.sitofp %17 : vector<32x256xi32> to vector<32x256xf32>
    %19 = vector.extract_strided_slice %1 {offsets = [0, 0], sizes = [32, 4], strides = [1, 1]} : vector<32x5xf32> to vector<32x4xf32>
    %cst_8 = arith.constant -5.000000e-01 : f32
    %20 = vector.broadcast %cst_8 : f32 to vector<32x4xf32>
    %21 = arith.mulf %19, %20 : vector<32x4xf32>
    %cst_9 = arith.constant dense<0.000000e+00> : vector<4x256xf32>
    %22 = tpu.matmul %21, %18, %cst_9 {dimension_numbers = #tpu.dot_dimension_numbers<[0], [0], [1], [1], [0, 1, 1, 1], [], []>} : vector<32x4xf32>, vector<32x256xf32>, vector<4x256xf32> -> vector<4x256xf32>
    %c0_10 = arith.constant 0 : index
    %c0_11 = arith.constant 0 : index
    %23 = vector.load %arg3[%c0_10, %c0_11] : memref<4x256xf32, #tpu.memory_space<vmem>>, vector<4x256xf32>
    tpu.vector_store %arg3[%c0_10, %c0_11], %22 {strides = array<i32>} : memref<4x256xf32, #tpu.memory_space<vmem>>, vector<4x256xf32>,
    %24 = vector.extract_strided_slice %0 {offsets = [0, 0], sizes = [4, 256], strides = [1, 1]} : vector<5x256xf32> to vector<4x256xf32>
    %25 = arith.subf %24, %22 : vector<4x256xf32>
    %26 = arith.mulf %25, %25 : vector<4x256xf32>
    %cst_12 = arith.constant dense<0.000000e+00> : vector<256xf32>
    %27 = vector.multi_reduction <add>, %26, %cst_12 [0] : vector<4x256xf32> to vector<256xf32>
    %28 = vector.shape_cast %27 : vector<256xf32> to vector<1x256xf32>
    %c0_13 = arith.constant 0 : index
    %c0_14 = arith.constant 0 : index
    %29 = vector.load %arg5[%c0_13, %c0_14] : memref<1x256xf32, #tpu.memory_space<vmem>>, vector<1x256xf32>
    tpu.vector_store %arg5[%c0_13, %c0_14], %28 {strides = array<i32>} : memref<1x256xf32, #tpu.memory_space<vmem>>, vector<1x256xf32>,
    return
  }
  func.func @transform_0(%arg0: i32) -> (i32, i32) {
    %c0_i32 = arith.constant 0 : i32
    %c0_i32_0 = arith.constant 0 : i32
    return %c0_i32, %arg0 : i32, i32
  }
  func.func @transform_1(%arg0: i32) -> (i32, i32) {
    %c0_i32 = arith.constant 0 : i32
    %c0_i32_0 = arith.constant 0 : i32
    %c0_i32_1 = arith.constant 0 : i32
    return %c0_i32, %c0_i32_0 : i32, i32
  }
  func.func @transform_2(%arg0: i32) -> (i32, i32) {
    %c0_i32 = arith.constant 0 : i32
    %c0_i32_0 = arith.constant 0 : i32
    return %c0_i32, %arg0 : i32, i32
  }
  func.func @transform_3(%arg0: i32) -> (i32, i32) {
    %c0_i32 = arith.constant 0 : i32
    %c0_i32_0 = arith.constant 0 : i32
    return %c0_i32, %arg0 : i32, i32
  }
  func.func @transform_4(%arg0: i32) -> (i32, i32) {
    %c0_i32 = arith.constant 0 : i32
    %c0_i32_0 = arith.constant 0 : i32
    return %c0_i32, %arg0 : i32, i32
  }
}

</mosaic_0001>

<llo_original>
// kernel: tpu_custom_call.1
$region0: #{tpu_custom_call.1}
  #allocation0 [shape = 'u32[]', space=smem, size = 0x4, offset = 0x4, fixed_abs, tag = 'smem constant byte address 0x4 - core index']
  #allocation1 [shape = 'u32[144,128]{1,0:T(1,128)}', space=vmem, size = 0x12000, scoped, tag = 'internal scratch']
  %s0 = inlined_call_operand.vmem [shape: f32[5,512], index: 0, kind: input, shape index: {}]
  %s1 = inlined_call_operand.vmem [shape: f32[32,5], index: 1, kind: input, shape index: {}]
  %s2 = inlined_call_operand.hbm [shape: f32[4,512], index: 2, kind: output, shape index: {0}]
  %s3 = inlined_call_operand.hbm [shape: s32[1,512], index: 3, kind: output, shape index: {1}]
  %s4 = inlined_call_operand.hbm [shape: f32[1,512], index: 4, kind: output, shape index: {2}]
  %5 = xla_tuple %s2, %s3, %s4
  %s6 = sld [smem:[#allocation0]]
  $region57: #{tpu_custom_call.1} parent=0
    _
  %s8 = ssub.s32 1, %s6
  %s9 = scalar_select 0, %s8, %s6
  $region1: #{tpu_custom_call.1} parent=0
    #allocation2 [shape = 'u8[8192]{0}', space=vmem, size = 0x2000, scoped, tag = 'output window, operand 0']
    #allocation3 [shape = 's32[2]{0}', space=sflag, size = 0x8, scoped, tag = 'scoped memory for tpu_custom_call.1']
    #allocation4 [shape = 'u8[2048]{0}', space=vmem, size = 0x800, scoped, tag = 'output window, operand 1']
    #allocation5 [shape = 's32[2]{0}', space=sflag, size = 0x8, scoped, tag = 'scoped memory for tpu_custom_call.1']
    #allocation6 [shape = 'u8[2048]{0}', space=vmem, size = 0x800, scoped, tag = 'output window, operand 2']
    %10 = vsyncpa [#allocation3], 0
    %s11 = scalar_lea.sflag [#allocation3], 1
    %12 = vsyncpa %s11, 0
    %13 = vsyncpa [#allocation5], 0
    %s14 = scalar_lea.sflag [#allocation5], 1
    %15 = vsyncpa %s14, 0
    loop: start=0, step=1, limit=4
    $region2: #{tpu_custom_call.1} parent=1 // loop_pre_header
      _
    $region3: #{tpu_custom_call.1} parent=1 // loop_header
      %s17 = sphi 0, %s21
      %p18 = scmp.ge.s32.totalorder %s17, 4
      %s27 = sphi 0, %s29
      %s30 = sphi 0, %s27
      %s31 = sphi 0, %s30
      %s47 = sphi 0, %s31
      %s51 = sphi 0, %s51
      %s53 = sphi 0, %s51
      %s54 = sphi 0, %s53
      %s68 = sphi 0, %s54
      %s74 = sphi 0, %s76
      %s77 = sphi 0, %s74
      %s78 = sphi 0, %s77
      %s94 = sphi 0, %s78
      %s100 = sphi 0, %s102
      %s103 = sphi 0, %s100
      %s104 = sphi 0, %s103
      %s120 = sphi 0, %s104
      %s126 = sphi 0, %s128
      %s129 = sphi 0, %s126
      %s130 = sphi 0, %s129
      %s146 = sphi 0, %s130
    $region4: #{tpu_custom_call.1} parent=1 // loop_header_branch
      %20 = sbr.rel (%p18) target = $region8
    $region5: #{tpu_custom_call.1} parent=1 // loop_body
      %s22 = ssub.s32 %s17, 1
      %s23 = ssub.s32 %s17, 2
      %s24 = sadd.s32 %s17, 1
      %s25 = ssub.s32 %s17, %s24
      %p26 = scmp.eq.s32.totalorder %s25, 0
      %s28 = sadd.s32 %s27, 1
      %s29 = scalar_select %p26, %s27, %s28
      %p32 = pneg %p26
      %p33 = scmp.eq.s32.totalorder %s17, 1
      %p34 = por %p32, %p33
      %p35 = scmp.ne.s32.totalorder %s27, %s30
      %p36 = scmp.eq.s32.totalorder %s17, 0
      %p37 = por %p35, %p36
      %p38 = scmp.ne.s32.totalorder %s27, %s30
      %p39 = scmp.eq.s32.totalorder %s22, 1
      %p40 = por %p38, %p39
      %p41 = scmp.ne.s32.totalorder %s30, %s31
      %p42 = scmp.eq.s32.totalorder %s22, 0
      %p43 = por %p41, %p42
      %p44 = scmp.ne.s32.totalorder %s30, %s31
      %p45 = scmp.eq.s32.totalorder %s23, 1
      %p46 = por %p44, %p45
      %p48 = scmp.ne.s32.totalorder %s31, %s47
      %p49 = scmp.eq.s32.totalorder %s23, 0
      %p50 = por %p48, %p49
      %s52 = sadd.s32 %s51, 1
      %p55 = scmp.eq.s32.totalorder %s17, 1
      %p56 = scmp.ne.s32.totalorder %s51, %s53
      %p57 = scmp.eq.s32.totalorder %s17, 0
      %p58 = por %p56, %p57
      %p59 = scmp.ne.s32.totalorder %s51, %s53
      %p60 = scmp.eq.s32.totalorder %s22, 1
      %p61 = por %p59, %p60
      %p62 = scmp.ne.s32.totalorder %s53, %s54
      %p63 = scmp.eq.s32.totalorder %s22, 0
      %p64 = por %p62, %p63
      %p65 = scmp.ne.s32.totalorder %s53, %s54
      %p66 = scmp.eq.s32.totalorder %s23, 1
      %p67 = por %p65, %p66
      %p69 = scmp.ne.s32.totalorder %s54, %s68
      %p70 = scmp.eq.s32.totalorder %s23, 0
      %p71 = por %p69, %p70
      %s72 = ssub.s32 %s17, %s24
      %p73 = scmp.eq.s32.totalorder %s72, 0
      %s75 = sadd.s32 %s74, 1
      %s76 = scalar_select %p73, %s74, %s75
      %p79 = pneg %p73
      %p80 = scmp.eq.s32.totalorder %s17, 1
      %p81 = por %p79, %p80
      %p82 = scmp.ne.s32.totalorder %s74, %s77
      %p83 = scmp.eq.s32.totalorder %s17, 0
      %p84 = por %p82, %p83
      %p85 = scmp.ne.s32.totalorder %s74, %s77
      %p86 = scmp.eq.s32.totalorder %s22, 1
      %p87 = por %p85, %p86
      %p88 = scmp.ne.s32.totalorder %s77, %s78
      %p89 = scmp.eq.s32.totalorder %s22, 0
      %p90 = por %p88, %p89
      %p91 = scmp.ne.s32.totalorder %s77, %s78
      %p92 = scmp.eq.s32.totalorder %s23, 1
      %p93 = por %p91, %p92
      %p95 = scmp.ne.s32.totalorder %s78, %s94
      %p96 = scmp.eq.s32.totalorder %s23, 0
      %p97 = por %p95, %p96
      %s98 = ssub.s32 %s17, %s24
      %p99 = scmp.eq.s32.totalorder %s98, 0
      %s101 = sadd.s32 %s100, 1
      %s102 = scalar_select %p99, %s100, %s101
      %p105 = pneg %p99
      %p106 = scmp.eq.s32.totalorder %s17, 1
      %p107 = por %p105, %p106
      %p108 = scmp.ne.s32.totalorder %s100, %s103
      %p109 = scmp.eq.s32.totalorder %s17, 0
      %p110 = por %p108, %p109
      %p111 = scmp.ne.s32.totalorder %s100, %s103
      %p112 = scmp.eq.s32.totalorder %s22, 1
      %p113 = por %p111, %p112
      %p114 = scmp.ne.s32.totalorder %s103, %s104
      %p115 = scmp.eq.s32.totalorder %s22, 0
      %p116 = por %p114, %p115
      %p117 = scmp.ne.s32.totalorder %s103, %s104
      %p118 = scmp.eq.s32.totalorder %s23, 1
      %p119 = por %p117, %p118
      %p121 = scmp.ne.s32.totalorder %s104, %s120
      %p122 = scmp.eq.s32.totalorder %s23, 0
      %p123 = por %p121, %p122
      %s124 = ssub.s32 %s17, %s24
      %p125 = scmp.eq.s32.totalorder %s124, 0
      %s127 = sadd.s32 %s126, 1
      %s128 = scalar_select %p125, %s126, %s127
      %p131 = pneg %p125
      %p132 = scmp.eq.s32.totalorder %s17, 1
      %p133 = por %p131, %p132
      %p134 = scmp.ne.s32.totalorder %s126, %s129
      %p135 = scmp.eq.s32.totalorder %s17, 0
      %p136 = por %p134, %p135
      %p137 = scmp.ne.s32.totalorder %s126, %s129
      %p138 = scmp.eq.s32.totalorder %s22, 1
      %p139 = por %p137, %p138
      %p140 = scmp.ne.s32.totalorder %s129, %s130
      %p141 = scmp.eq.s32.totalorder %s22, 0
      %p142 = por %p140, %p141
      %p143 = scmp.ne.s32.totalorder %s129, %s130
      %p144 = scmp.eq.s32.totalorder %s23, 1
      %p145 = por %p143, %p144
      %p147 = scmp.ne.s32.totalorder %s130, %s146
      %p148 = scmp.eq.s32.totalorder %s23, 0
      %p149 = por %p147, %p148
      %p150 = scmp.le.s32.totalorder 1, %s17
      %p151 = scmp.lt.s32.totalorder %s17, 3
      %p152 = pnand %p150, %p151
      %p153 = pneg %p152
      // Predicated region
      $region9: #{tpu_custom_call.1} parent=5 // pred_check
        _
      $region10: #{tpu_custom_call.1} parent=5 // pred_check_branch
        %155 = sbr.rel (%p152) target = $region12
      $region11: #{tpu_custom_call.1} parent=5 // pred_region
        %s156 = ssub.s32 %s17, 1
        // Predicated region
        $region13: #{tpu_custom_call.1} parent=11 // pred_check
          %p157 = pneg %p64
        $region14: #{tpu_custom_call.1} parent=11 // pred_check_branch
          %159 = sbr.rel (%p157) target = $region16
        $region15: #{tpu_custom_call.1} parent=11 // pred_region
          _
        $region16: #{tpu_custom_call.1} parent=11 // pred_fallthru
          _
      $region12: #{tpu_custom_call.1} parent=5 // pred_fallthru
        _
      %p160 = scmp.lt.s32.totalorder %s17, 2
      // Predicated region
      $region17: #{tpu_custom_call.1} parent=5 // pred_check
        %p161 = pneg %p160
      $region18: #{tpu_custom_call.1} parent=5 // pred_check_branch
        %163 = sbr.rel (%p161) target = $region20
      $region19: #{tpu_custom_call.1} parent=5 // pred_region
        // Predicated region
        $region21: #{tpu_custom_call.1} parent=19 // pred_check
          %p164 = pneg %p37
        $region22: #{tpu_custom_call.1} parent=19 // pred_check_branch
          %166 = sbr.rel (%p164) target = $region24
        $region23: #{tpu_custom_call.1} parent=19 // pred_region
          %s167 = smul.u32 2, %s17
          %p168 = scmp.lt.s32.totalorder %s167, 3
          %s169 = scalar_select %p168, %s167, 3
          %s170 = smul.addr %s169, 8
          %s171 = scalar_lea.vmem %s0, %s170
          %s172 = smul.u32 2, %s17
        $region24: #{tpu_custom_call.1} parent=19 // pred_fallthru
          _
      $region20: #{tpu_custom_call.1} parent=5 // pred_fallthru
        _
      %p173 = scmp.le.s32.totalorder 1, %s17
      %p174 = scmp.lt.s32.totalorder %s17, 3
      %p175 = pnand %p173, %p174
      %p176 = pneg %p175
      // Predicated region
      $region25: #{tpu_custom_call.1} parent=5 // pred_check
        _
      $region26: #{tpu_custom_call.1} parent=5 // pred_check_branch
        %178 = sbr.rel (%p175) target = $region28
      $region27: #{tpu_custom_call.1} parent=5 // pred_region
        %s179 = ssub.s32 %s17, 1
        %s180 = smul.u32 2, %s22
        %p181 = scmp.lt.s32.totalorder %s180, 3
        %s182 = scalar_select %p181, %s180, 3
        %s183 = smul.addr %s182, 8
        %s184 = scalar_lea.vmem %s0, %s183
        %p185 = pneg %p43
        %p186 = pneg %p40
        %p187 = pneg %p64
        %p188 = pneg %p61
        %p189 = pneg %p90
        %p190 = pneg %p87
        %s191 = sand.u32 %s77, 1
        %s192 = scalar_lea.sflag [#allocation3], %s191
        %s193 = sand.u32 %s77, 1
        %s194 = smul.addr %s193, 8
        %s195 = scalar_lea.vmem [#allocation2], %s194
        %p196 = pneg %p116
        %p197 = pneg %p113
        %s198 = sand.u32 %s22, 1
        %s199 = scalar_lea.sflag [#allocation5], %s198
        %s200 = sand.u32 %s103, 1
        %s201 = smul.addr %s200, 2
        %s202 = scalar_lea.vmem [#allocation4], %s201
        %p203 = pneg %p142
        %p204 = pneg %p139
        %s205 = sand.u32 %s22, 1
        %s206 = scalar_lea.sflag [#allocation5], %s205
        %s207 = sand.u32 %s129, 1
        %s208 = smul.addr %s207, 2
        %s209 = scalar_lea.vmem [#allocation6], %s208
        %s210 = smul.u32 2, %s22
        %p211 = scmp.lt.s32.totalorder %s210, 3
        %s212 = scalar_select %p211, %s210, 3
        %s213 = smul.addr %s212, 8
        %s214 = scalar_lea.vmem %s0, %s213
        %s215 = smul.u32 2, %s22
        %s216 = smul.u32 2, %s22
        %s217 = smul.u32 2, %s22
        %s218 = smul.u32 2, %s22
        %v219 = vld [vmem:[%s214] sm:$0x1f]
        %v220 = vld [vmem:[%s214 + $0x8] sm:$0x1f]
        %v221 = vld [vmem:[%s1] sm:$0xff]
        %v222 = vld [vmem:[%s1 + $0x8] sm:$0xff]
        %v223 = vld [vmem:[%s1 + $0x10] sm:$0xff]
        %v224 = vld [vmem:[%s1 + $0x18] sm:$0xff]
        %vm225 = vcmask 39936
        %v227 = vsel %vm225, %v221, 0
        %v230 = vsel %vm225, %v222, 0
        %v233 = vsel %vm225, %v223, 0
        %v236 = vsel %vm225, %v224, 0
        %vm238 = vcmask 1044480
        %v240 = vsel %vm238, %v219, 0
        %v243 = vsel %vm238, %v220, 0
        %245 = vmatprep.subr.mxu0 0.0
        %246 = vmatpush1.msra.mxu0 0.0
        %247 = vmatprep.subr.mxu0 0.0
        %248 = vmatpush1.msra.mxu0 0.0
        %249 = vmatprep.subr.mxu0 0.0
        %250 = vmatpush1.msra.mxu0 0.0
        %251 = vmatprep.subr.mxu0 0.0
        %252 = vmatpush1.msra.mxu0 0.0
        %253 = vmatprep.subr.mxu0 0.0
        %254 = vmatpush1.msra.mxu0 0.0
        %255 = vmatprep.subr.mxu0 0.0
        %256 = vmatpush1.msra.mxu0 0.0
        %257 = vmatprep.subr.mxu0 0.0
        %258 = vmatpush1.msra.mxu0 0.0
        %259 = vmatprep.subr.mxu0 0.0
        %260 = vmatpush1.msra.mxu0 0.0
        %261 = vmatprep.subr.mxu0 0.0
        %262 = vmatpush1.msra.mxu0 0.0
        %263 = vmatprep.subr.mxu0 0.0
        %264 = vmatpush1.msra.mxu0 0.0
        %265 = vmatprep.subr.mxu0 0.0
        %266 = vmatpush1.msra.mxu0 0.0
        %267 = vmatprep.subr.mxu0 0.0
        %268 = vmatpush1.msra.mxu0 0.0
        %269 = vmatprep.subr.mxu0 0.0
        %270 = vmatpush1.msra.mxu0 0.0
        %271 = vmatprep.subr.mxu0 0.0
        %272 = vmatpush1.msra.mxu0 0.0
        %273 = vmatprep.subr.mxu0 0.0
        %274 = vmatpush1.msra.mxu0 0.0
        %275 = vmatprep.subr.mxu0 %v243
        %276 = vmatpush1.msra.mxu0 %v240
        %277 = vmatprep.subr.mxu0 0.0
        %278 = vmatpush2.msra.mxu0 0.0
        %279 = vmatprep.subr.mxu0 0.0
        %280 = vmatpush2.msra.mxu0 0.0
        %281 = vmatprep.subr.mxu0 0.0
        %282 = vmatpush2.msra.mxu0 0.0
        %283 = vmatprep.subr.mxu0 0.0
        %284 = vmatpush2.msra.mxu0 0.0
        %285 = vmatprep.subr.mxu0 0.0
        %286 = vmatpush2.msra.mxu0 0.0
        %287 = vmatprep.subr.mxu0 0.0
        %288 = vmatpush2.msra.mxu0 0.0
        %289 = vmatprep.subr.mxu0 0.0
        %290 = vmatpush2.msra.mxu0 0.0
        %291 = vmatprep.subr.mxu0 0.0
        %292 = vmatpush2.msra.mxu0 0.0
        %293 = vmatprep.subr.mxu0 0.0
        %294 = vmatpush2.msra.mxu0 0.0
        %295 = vmatprep.subr.mxu0 0.0
        %296 = vmatpush2.msra.mxu0 0.0
        %297 = vmatprep.subr.mxu0 0.0
        %298 = vmatpush2.msra.mxu0 0.0
        %299 = vmatprep.subr.mxu0 0.0
        %300 = vmatpush2.msra.mxu0 0.0
        %301 = vmatprep.subr.mxu0 0.0
        %302 = vmatpush2.msra.mxu0 0.0
        %303 = vmatprep.subr.mxu0 0.0
        %304 = vmatpush2.msra.mxu0 0.0
        %305 = vmatprep.subr.mxu0 0.0
        %306 = vmatpush2.msra.mxu0 0.0
        %307 = vmatprep.subr.mxu0 0.0
        %308 = vmatpush2.msra.mxu0 0.0
        %309 = vmatprep.mubr.f32.mxu0 0.0
        %310 = vmatmul.mubr.f32.gmra.mxu0 %v227
        %v311 = vpop.f32.mrf.mxu0
        %v312 = vadd.f32 0.0, %v311
        %v313 = vpop.f32.mrf.mxu0
        %v314 = vadd.f32 0.0, %v313
        %315 = vmatprep.mubr.f32.mxu0 0.0
        %316 = vmatmul.mubr.f32.gmra.mxu0 %v230
        %v317 = vpop.f32.mrf.mxu0
        %v318 = vadd.f32 0.0, %v317
        %v319 = vpop.f32.mrf.mxu0
        %v320 = vadd.f32 0.0, %v319
        %321 = vmatprep.mubr.f32.mxu0 0.0
        %322 = vmatmul.mubr.f32.gmra.mxu0 %v233
        %v323 = vpop.f32.mrf.mxu0
        %v324 = vadd.f32 0.0, %v323
        %v325 = vpop.f32.mrf.mxu0
        %v326 = vadd.f32 0.0, %v325
        %327 = vmatprep.mubr.f32.mxu0 0.0
        %328 = vmatmul.mubr.f32.gmra.mxu0 %v236
        %v329 = vpop.f32.mrf.mxu0
        %v330 = vadd.f32 0.0, %v329
        %v331 = vpop.f32.mrf.mxu0
        %v332 = vadd.f32 0.0, %v331
        %333 = vdwg.mxu0
        %v334 = vlaneseq
        %v335 = vshrl.u32 %v334, 7
        %v336 = vadd.s32 %v335, 8
        %v337 = vadd.s32 %v335, 16
        %v338 = vadd.s32 %v335, 24
        %v339 = vcvt.s32.f32 %v335
        %v340 = vcvt.s32.f32 %v336
        %v341 = vcvt.s32.f32 %v337
        %v342 = vcvt.s32.f32 %v338
        %v343 = vmin.f32 %v312, %v324
        %v344 = vmin.f32 %v318, %v330
        %v345 = vmin.f32 %v343, %v344
        %v346 = vrot.slane %v345, 4
        %v347 = vmin.f32 %v345, %v346
        %v348 = vrot.slane %v347, 2
        %v349 = vmin.f32 %v347, %v348
        %v350 = vrot.slane %v349, 1
        %v351 = vmin.f32 %v349, %v350
        %v352 = vmin.f32 %v314, %v326
        %v353 = vmin.f32 %v320, %v332
        %v354 = vmin.f32 %v352, %v353
        %v355 = vrot.slane %v354, 4
        %v356 = vmin.f32 %v354, %v355
        %v357 = vrot.slane %v356, 2
        %v358 = vmin.f32 %v356, %v357
        %v359 = vrot.slane %v358, 1
        %v360 = vmin.f32 %v358, %v359
        %vm361 = vcmp.eq.f32.partialorder %v312, %v351
        %vm362 = vcmp.eq.f32.partialorder %v314, %v360
        %vm363 = vcmp.eq.f32.partialorder %v318, %v351
        %vm364 = vcmp.eq.f32.partialorder %v320, %v360
        %vm365 = vcmp.eq.f32.partialorder %v324, %v351
        %vm366 = vcmp.eq.f32.partialorder %v326, %v360
        %vm367 = vcmp.eq.f32.partialorder %v330, %v351
        %vm368 = vcmp.eq.f32.partialorder %v332, %v360
        %v369 = vsel %vm361, %v339, 32.0
        %v370 = vsel %vm362, %v339, 32.0
        %v371 = vsel %vm363, %v340, 32.0
        %v372 = vsel %vm364, %v340, 32.0
        %v373 = vsel %vm365, %v341, 32.0
        %v374 = vsel %vm366, %v341, 32.0
        %v375 = vsel %vm367, %v342, 32.0
        %v376 = vsel %vm368, %v342, 32.0
        %v377 = vmin.f32 %v369, %v373
        %v378 = vmin.f32 %v371, %v375
        %v379 = vmin.f32 %v377, %v378
        %v380 = vrot.slane %v379, 4
        %v381 = vmin.f32 %v379, %v380
        %v382 = vrot.slane %v381, 2
        %v383 = vmin.f32 %v381, %v382
        %v384 = vrot.slane %v383, 1
        %v385 = vmin.f32 %v383, %v384
        %v386 = vmin.f32 %v370, %v374
        %v387 = vmin.f32 %v372, %v376
        %v388 = vmin.f32 %v386, %v387
        %v389 = vrot.slane %v388, 4
        %v390 = vmin.f32 %v388, %v389
        %v391 = vrot.slane %v390, 2
        %v392 = vmin.f32 %v390, %v391
        %v393 = vrot.slane %v392, 1
        %v394 = vmin.f32 %v392, %v393
        %v395 = vcvt.f32.s32.to.zero.pseudo %v385
        %v396 = vcvt.f32.s32.to.zero.pseudo %v394
        %v397 = vcombine.low %v395, %v396
        %v399 = vunpack.c.l.s4 1966171168
        %v400 = vunpack.c.0.s8 %v399
        %v401 = vlaneseq
        %v402 = vshrl.u32 %v401, 7
        %v403 = vsub.s32 %v400, %v402
        %v404 = vrot.slane %v397, %v403
        %v406 = vunpack.c.l.s4 1966171168
        %v407 = vunpack.c.0.s8 %v406
        %v408 = vlaneseq
        %v409 = vshrl.u32 %v408, 7
        %v410 = vsub.s32 %v407, %v409
        %v411 = vrot.slane %v404, %v410
        %v412 = vlaneseq
        %vm413 = vcmp.ge.s32.totalorder %v412, 0
        %vm414 = vcmp.lt.s32.totalorder %v412, 256
        %vm415 = vmand %vm413, %vm414
        %416 = vst.msk [vmem:[%s202] sm:$0x3] %vm415, %v411
        %vm417 = vcmp.eq.f32.partialorder %v339, %v385
        %vm418 = vcmp.eq.f32.partialorder %v339, %v394
        %vm419 = vcmp.eq.f32.partialorder %v340, %v385
        %vm420 = vcmp.eq.f32.partialorder %v340, %v394
        %vm421 = vcmp.eq.f32.partialorder %v341, %v385
        %vm422 = vcmp.eq.f32.partialorder %v341, %v394
        %vm423 = vcmp.eq.f32.partialorder %v342, %v385
        %vm424 = vcmp.eq.f32.partialorder %v342, %v394
        %v425 = vsel %vm417, 1, 0
        %v426 = vsel %vm418, 1, 0
        %v427 = vsel %vm419, 1, 0
        %v428 = vsel %vm420, 1, 0
        %v429 = vsel %vm421, 1, 0
        %v430 = vsel %vm422, 1, 0
        %v431 = vsel %vm423, 1, 0
        %v432 = vsel %vm424, 1, 0
        %v433 = vcvt.s32.f32 %v425
        %v434 = vcvt.s32.f32 %v426
        %v435 = vcvt.s32.f32 %v427
        %v436 = vcvt.s32.f32 %v428
        %v437 = vcvt.s32.f32 %v429
        %v438 = vcvt.s32.f32 %v430
        %v439 = vcvt.s32.f32 %v431
        %v440 = vcvt.s32.f32 %v432
        %v441 = vmul.f32 %v221, -0.5
        %v442 = vmul.f32 %v222, -0.5
        %v443 = vmul.f32 %v223, -0.5
        %v444 = vmul.f32 %v224, -0.5
        %445 = vxpose.xlu0.b32.start [1/16] %v441, 128
        %446 = vxpose.xlu0.b32.cont [2/16] %v442, 128
        %447 = vxpose.xlu0.b32.cont [3/16] %v443, 128
        %448 = vxpose.xlu0.b32.cont [4/16] %v444, 128
        %449 = vxpose.xlu0.b32.cont [5/16] 0.0, 128
        %450 = vxpose.xlu0.b32.cont [6/16] 0.0, 128
        %451 = vxpose.xlu0.b32.cont [7/16] 0.0, 128
        %452 = vxpose.xlu0.b32.cont [8/16] 0.0, 128
        %453 = vxpose.xlu0.b32.cont [9/16] 0.0, 128
        %454 = vxpose.xlu0.b32.cont [10/16] 0.0, 128
        %455 = vxpose.xlu0.b32.cont [11/16] 0.0, 128
        %456 = vxpose.xlu0.b32.cont [12/16] 0.0, 128
        %457 = vxpose.xlu0.b32.cont [13/16] 0.0, 128
        %458 = vxpose.xlu0.b32.cont [14/16] 0.0, 128
        %459 = vxpose.xlu0.b32.cont [15/16] 0.0, 128
        %460 = vxpose.xlu0.b32.end [16/16] 0.0, 128
        %v461 = vpop.trf.xlu0
        %v462 = vpop.trf.xlu0
        %v463 = vpop.trf.xlu0
        %v464 = vpop.trf.xlu0
        %v465 = vpop.trf.xlu0
        %v466 = vpop.trf.xlu0
        %v467 = vpop.trf.xlu0
        %v468 = vpop.trf.xlu0
        %v469 = vpop.trf.xlu0
        %v470 = vpop.trf.xlu0
        %v471 = vpop.trf.xlu0
        %v472 = vpop.trf.xlu0
        %v473 = vpop.trf.xlu0
        %v474 = vpop.trf.xlu0
        %v475 = vpop.trf.xlu0
        %v476 = vpop.trf.xlu0
        %vm477 = vcmask 261120
        %v479 = vsel %vm477, %v461, 0
        %481 = vmatprep.subr.mxu0 0.0
        %482 = vmatpush1.msra.mxu0 0.0
        %483 = vmatprep.subr.mxu0 0.0
        %484 = vmatpush1.msra.mxu0 0.0
        %485 = vmatprep.subr.mxu0 0.0
        %486 = vmatpush1.msra.mxu0 0.0
        %487 = vmatprep.subr.mxu0 0.0
        %488 = vmatpush1.msra.mxu0 0.0
        %489 = vmatprep.subr.mxu0 0.0
        %490 = vmatpush1.msra.mxu0 0.0
        %491 = vmatprep.subr.mxu0 0.0
        %492 = vmatpush1.msra.mxu0 0.0
        %493 = vmatprep.subr.mxu0 0.0
        %494 = vmatpush1.msra.mxu0 0.0
        %495 = vmatprep.subr.mxu0 0.0
        %496 = vmatpush1.msra.mxu0 0.0
        %497 = vmatprep.subr.mxu0 0.0
        %498 = vmatpush1.msra.mxu0 0.0
        %499 = vmatprep.subr.mxu0 0.0
        %500 = vmatpush1.msra.mxu0 0.0
        %501 = vmatprep.subr.mxu0 0.0
        %502 = vmatpush1.msra.mxu0 0.0
        %503 = vmatprep.subr.mxu0 0.0
        %504 = vmatpush1.msra.mxu0 0.0
        %505 = vmatprep.subr.mxu0 %v440
        %506 = vmatpush1.msra.mxu0 %v439
        %507 = vmatprep.subr.mxu0 %v438
        %508 = vmatpush1.msra.mxu0 %v437
        %509 = vmatprep.subr.mxu0 %v436
        %510 = vmatpush1.msra.mxu0 %v435
        %511 = vmatprep.subr.mxu0 %v434
        %512 = vmatpush1.msra.mxu0 %v433
        %513 = vmatprep.subr.mxu0 0.0
        %514 = vmatpush2.msra.mxu0 0.0
        %515 = vmatprep.subr.mxu0 0.0
        %516 = vmatpush2.msra.mxu0 0.0
        %517 = vmatprep.subr.mxu0 0.0
        %518 = vmatpush2.msra.mxu0 0.0
        %519 = vmatprep.subr.mxu0 0.0
        %520 = vmatpush2.msra.mxu0 0.0
        %521 = vmatprep.subr.mxu0 0.0
        %522 = vmatpush2.msra.mxu0 0.0
        %523 = vmatprep.subr.mxu0 0.0
        %524 = vmatpush2.msra.mxu0 0.0
        %525 = vmatprep.subr.mxu0 0.0
        %526 = vmatpush2.msra.mxu0 0.0
        %527 = vmatprep.subr.mxu0 0.0
        %528 = vmatpush2.msra.mxu0 0.0
        %529 = vmatprep.subr.mxu0 0.0
        %530 = vmatpush2.msra.mxu0 0.0
        %531 = vmatprep.subr.mxu0 0.0
        %532 = vmatpush2.msra.mxu0 0.0
        %533 = vmatprep.subr.mxu0 0.0
        %534 = vmatpush2.msra.mxu0 0.0
        %535 = vmatprep.subr.mxu0 0.0
        %536 = vmatpush2.msra.mxu0 0.0
        %537 = vmatprep.subr.mxu0 0.0
        %538 = vmatpush2.msra.mxu0 0.0
        %539 = vmatprep.subr.mxu0 0.0
        %540 = vmatpush2.msra.mxu0 0.0
        %541 = vmatprep.subr.mxu0 0.0
        %542 = vmatpush2.msra.mxu0 0.0
        %543 = vmatprep.subr.mxu0 0.0
        %544 = vmatpush2.msra.mxu0 0.0
        %545 = vmatprep.mubr.f32.mxu0 0.0
        %546 = vmatmul.mubr.f32.gmra.mxu0 %v479
        %v547 = vpop.f32.mrf.mxu0
        %v548 = vadd.f32 0.0, %v547
        %v549 = vpop.f32.mrf.mxu0
        %v550 = vadd.f32 0.0, %v549
        %551 = vdwg.mxu0
        %v554 = vcombine.low %v548, %v550
        %556 = vst [vmem:[%s195] sm:$0xff] %v554
        %v557 = vsub.f32 %v219, %v548
        %v558 = vsub.f32 %v220, %v550
        %v559 = vmul.f32 %v557, %v557
        %v560 = vmul.f32 %v558, %v558
        %vm561 = vcmask 1043456
        %v562 = vsel %vm561, %v559, 0.0
        %v563 = vrot.slane %v562, 4
        %v564 = vadd.f32 %v562, %v563
        %v565 = vrot.slane %v564, 2
        %v566 = vadd.f32 %v564, %v565
        %v567 = vrot.slane %v566, 1
        %v568 = vadd.f32 %v566, %v567
        %v569 = vsel %vm561, %v560, 0.0
        %v570 = vrot.slane %v569, 4
        %v571 = vadd.f32 %v569, %v570
        %v572 = vrot.slane %v571, 2
        %v573 = vadd.f32 %v571, %v572
        %v574 = vrot.slane %v573, 1
        %v575 = vadd.f32 %v573, %v574
        %v578 = vcombine.low %v568, %v575
        %v580 = vunpack.c.l.s4 1966171168
        %v581 = vunpack.c.0.s8 %v580
        %v582 = vlaneseq
        %v583 = vshrl.u32 %v582, 7
        %v584 = vsub.s32 %v581, %v583
        %v585 = vrot.slane %v578, %v584
        %v587 = vunpack.c.l.s4 1966171168
        %v588 = vunpack.c.0.s8 %v587
        %v589 = vlaneseq
        %v590 = vshrl.u32 %v589, 7
        %v591 = vsub.s32 %v588, %v590
        %v592 = vrot.slane %v585, %v591
        %594 = vst.msk [vmem:[%s209] sm:$0x3] %vm415, %v592
        %s595 = sand.u32 %s77, 1
        %s596 = scalar_lea.sflag [#allocation3], %s595
        %s597 = sand.u32 %s77, 1
        %s598 = smul.addr %s597, 8
        %s599 = scalar_lea.vmem [#allocation2], %s598
        %s600 = sand.u32 %s22, 1
        %s601 = scalar_lea.sflag [#allocation5], %s600
        %s602 = sand.u32 %s103, 1
        %s603 = smul.addr %s602, 2
        %s604 = scalar_lea.vmem [#allocation4], %s603
        %s605 = sand.u32 %s22, 1
        %s606 = scalar_lea.sflag [#allocation5], %s605
        %s607 = sand.u32 %s129, 1
        %s608 = smul.addr %s607, 2
        %s609 = scalar_lea.vmem [#allocation6], %s608
        // Predicated region
        $region29: #{tpu_custom_call.1} parent=27 // pred_check
          %p610 = pneg %p87
        $region30: #{tpu_custom_call.1} parent=27 // pred_check_branch
          %612 = sbr.rel (%p610) target = $region32
        $region31: #{tpu_custom_call.1} parent=27 // pred_region
          %s613 = smul.u32 2, %s22
          %s615 = ssub.s32 128, 128
          %616 = vsyncadd %s596, %s615
          %s617 = smul.addr %s613, 64
          %s618 = scalar_lea.hbm %s2, %s617
          %s620 = sshll.u32 %s599, 4
          %s621 = int_to_ptr.vmem [resolvable:$true] %s620
          %623 = dma.vmem_to_hbm [thread:$0]  %s621, 128, %s618, %s596
        $region32: #{tpu_custom_call.1} parent=27 // pred_fallthru
          _
        // Predicated region
        $region33: #{tpu_custom_call.1} parent=27 // pred_check
          %p624 = pneg %p113
        $region34: #{tpu_custom_call.1} parent=27 // pred_check_branch
          %626 = sbr.rel (%p624) target = $region36
        $region35: #{tpu_custom_call.1} parent=27 // pred_region
          %s627 = smul.u32 2, %s22
          %s629 = ssub.s32 32, 32
          %630 = vsyncadd %s601, %s629
          %s631 = smul.addr %s627, 16
          %s632 = scalar_lea.hbm %s3, %s631
          %s634 = sshll.u32 %s604, 4
          %s635 = int_to_ptr.vmem [resolvable:$true] %s634
          %637 = dma.vmem_to_hbm [thread:$0]  %s635, 32, %s632, %s601
        $region36: #{tpu_custom_call.1} parent=27 // pred_fallthru
          _
        // Predicated region
        $region37: #{tpu_custom_call.1} parent=27 // pred_check
          %p638 = pneg %p139
        $region38: #{tpu_custom_call.1} parent=27 // pred_check_branch
          %640 = sbr.rel (%p638) target = $region40
        $region39: #{tpu_custom_call.1} parent=27 // pred_region
          %s641 = smul.u32 2, %s22
          %s643 = ssub.s32 32, 32
          %644 = vsyncadd %s606, %s643
          %s645 = smul.addr %s641, 16
          %s646 = scalar_lea.hbm %s4, %s645
          %s648 = sshll.u32 %s609, 4
          %s649 = int_to_ptr.vmem [resolvable:$true] %s648
          %651 = dma.vmem_to_hbm [thread:$0]  %s649, 32, %s646, %s606
        $region40: #{tpu_custom_call.1} parent=27 // pred_fallthru
          _
      $region28: #{tpu_custom_call.1} parent=5 // pred_fallthru
        _
      %p652 = scmp.le.s32.totalorder 2, %s17
      // Predicated region
      $region41: #{tpu_custom_call.1} parent=5 // pred_check
        %p653 = pneg %p652
      $region42: #{tpu_custom_call.1} parent=5 // pred_check_branch
        %655 = sbr.rel (%p653) target = $region44
      $region43: #{tpu_custom_call.1} parent=5 // pred_region
        %s656 = ssub.s32 %s17, 2
        // Predicated region
        $region45: #{tpu_custom_call.1} parent=43 // pred_check
          %p657 = pneg %p93
        $region46: #{tpu_custom_call.1} parent=43 // pred_check_branch
          %659 = sbr.rel (%p657) target = $region48
        $region47: #{tpu_custom_call.1} parent=43 // pred_region
          %s660 = sand.u32 %s78, 1
          %s661 = scalar_lea.sflag [#allocation3], %s660
          %s662 = sand.u32 %s78, 1
          %s663 = smul.addr %s662, 8
          %s664 = scalar_lea.vmem [#allocation2], %s663
          %665 = dma.done %s661, 128
        $region48: #{tpu_custom_call.1} parent=43 // pred_fallthru
          _
        // Predicated region
        $region49: #{tpu_custom_call.1} parent=43 // pred_check
          %p666 = pneg %p119
        $region50: #{tpu_custom_call.1} parent=43 // pred_check_branch
          %668 = sbr.rel (%p666) target = $region52
        $region51: #{tpu_custom_call.1} parent=43 // pred_region
          %s669 = sand.u32 %s23, 1
          %s670 = scalar_lea.sflag [#allocation5], %s669
          %s671 = sand.u32 %s104, 1
          %s672 = smul.addr %s671, 2
          %s673 = scalar_lea.vmem [#allocation4], %s672
          %674 = dma.done %s670, 32
        $region52: #{tpu_custom_call.1} parent=43 // pred_fallthru
          _
        // Predicated region
        $region53: #{tpu_custom_call.1} parent=43 // pred_check
          %p675 = pneg %p145
        $region54: #{tpu_custom_call.1} parent=43 // pred_check_branch
          %677 = sbr.rel (%p675) target = $region56
        $region55: #{tpu_custom_call.1} parent=43 // pred_region
          %s678 = sand.u32 %s23, 1
          %s679 = scalar_lea.sflag [#allocation5], %s678
          %s680 = sand.u32 %s130, 1
          %s681 = smul.addr %s680, 2
          %s682 = scalar_lea.vmem [#allocation6], %s681
          %683 = dma.done %s679, 32
        $region56: #{tpu_custom_call.1} parent=43 // pred_fallthru
          _
      $region44: #{tpu_custom_call.1} parent=5 // pred_fallthru
        _
    $region6: #{tpu_custom_call.1} parent=1 // loop_footer
      %s21 = sadd.s32 1, %s17
    $region7: #{tpu_custom_call.1} parent=1 // loop_footer_branch
      %16 = sbr.rel target = $region3
    $region8: #{tpu_custom_call.1} parent=1 // loop_exit
      _
    %684 = vsyncpa [#allocation3], 1
    %s685 = scalar_lea.sflag [#allocation3], 1
    %686 = vsyncpa %s685, 1
    %687 = vsyncpa [#allocation5], 1
    %s688 = scalar_lea.sflag [#allocation5], 1
    %689 = vsyncpa %s688, 1

</llo_original>
